<compile_context>
chip_gen: v7x
topology: tpu7x:2x2x1
jax: 0.10.0
libtpu: 0.0.40
codegen_flags: <defaults>
</compile_context>

<pallas_src>
import functools

import jax
import jax.numpy as jnp
from jax.experimental import pallas as pl
from jax.experimental.pallas import tpu as pltpu

BN_EPS = 1e-5  # nn.BatchNorm2d default


def _conv_stats_kernel(p_ref, wt_ref, part_ref):
    """Pass 1: conv-as-matmul on one M tile, accumulate per-channel stats.

    part_ref is a resident (OCP, 2) accumulator for this grid "part":
    column 0 = sum over the part's M columns, column 1 = sum of squares.
    """
    j = pl.program_id(1)

    @pl.when(j == 0)
    def _():
        part_ref[...] = jnp.zeros_like(part_ref)

    # (OCP, KK) @ (KK, TM) -> (OCP, TM): channels on sublanes, M on lanes.
    y = jnp.dot(wt_ref[...], p_ref[...], preferred_element_type=jnp.float32)
    part_ref[:, 0:1] = part_ref[:, 0:1] + jnp.sum(y, axis=1, keepdims=True)
    part_ref[:, 1:2] = part_ref[:, 1:2] + jnp.sum(y * y, axis=1, keepdims=True)


def _conv_bn_prelu_kernel(p_ref, wt_ref, aff_ref, o_ref):
    """Pass 2: recompute the conv tile, apply folded BN affine + PReLU, and
    store a lane-dense (OC, TM) block (no channel padding on the output)."""
    oc = o_ref.shape[0]
    y = jnp.dot(wt_ref[...], p_ref[...], preferred_element_type=jnp.float32)
    y = y[:oc, :]                                       # drop padded channels
    y = y * aff_ref[:, 0:1] + aff_ref[:, 1:2]           # fused BN: scale, shift
    o_ref[...] = jnp.where(y >= 0.0, y, aff_ref[:, 2:3] * y).astype(o_ref.dtype)


def _round_up(x, mult):
    return ((x + mult - 1) // mult) * mult


def _im2col_t_nhwc(x_nhwc, kernel_size, stride):
    """Unfold (N,H,W,C) into a TRANSPOSED patch matrix (k*k*C, N*Ho*Wo)."""
    n, h, w, c = x_nhwc.shape
    k = kernel_size
    pad = k // 2
    xp = jnp.pad(x_nhwc, ((0, 0), (pad, pad), (pad, pad), (0, 0)))
    ho = (h + 2 * pad - k) // stride + 1
    wo = (w + 2 * pad - k) // stride + 1
    m = n * ho * wo
    rows = []
    for i in range(k):
        for j in range(k):
            piece = xp[:, i:i + stride * ho:stride, j:j + stride * wo:stride, :]
            rows.append(jnp.transpose(piece, (3, 0, 1, 2)).reshape(c, m))
    return jnp.concatenate(rows, axis=0), ho, wo        # (k*k*C, M)


@functools.partial(jax.jit, static_argnums=(6, 7),
                   static_argnames=("mxu_dtype", "tile_m"))
def convolutional_block(x_nchw, weight_oihw, bias, gamma, beta, prelu_alpha,
                        kernel_size, stride=1, *, mxu_dtype=jnp.float32,
                        tile_m=1024):
    """Forward of ConvolutionalBlock(batch_norm=True, activation='prelu')."""
    # Conv bias cancels exactly under training-mode BatchNorm -> dead compute.
    del bias
    n, c_in, h, w = x_nchw.shape
    oc = weight_oihw.shape[0]
    k = kernel_size

    # TODO(synk): stream NHWC row tiles (with a k-row halo) straight from HBM
    # and accumulate k*k tap matmuls in-kernel instead of materializing the
    # k*k-inflated patch matrix via XLA-side im2col.
    x_nhwc = jnp.transpose(x_nchw, (0, 2, 3, 1))
    patches_t, ho, wo = _im2col_t_nhwc(x_nhwc, k, stride)       # (KK, M)
    kk, m = patches_t.shape

    # Weights as (OCP, KK): channels on sublanes.  128-lane padding is only
    # for the MXU operand; the stored output keeps the real OC.
    ocp = _round_up(max(oc, 128), 128)
    w_t = jnp.transpose(weight_oihw, (0, 2, 3, 1)).reshape(oc, kk)
    w_t = jnp.pad(w_t, ((0, ocp - oc), (0, 0)))

    # Tile the M (lane) axis; pad with zero patch columns (they contribute 0
    # to the sums and the statistics divide by the true M -> BN is exact).
    tm = min(tile_m, _round_up(m, 128))
    tm = max(128, (tm // 128) * 128)
    tiles = -(-m // tm)
    num_parts = 2 if tiles >= 2 else 1        # v7x: split stats over 2 TCs
    tiles = _round_up(tiles, num_parts)
    m_pad = tiles * tm
    if m_pad != m:
        patches_t = jnp.pad(patches_t, ((0, 0), (0, m_pad - m)))
    tiles_per_part = tiles // num_parts

    patches_t = patches_t.astype(mxu_dtype)   # bf16 fine on v5e/v6e/v7x MXUs
    w_t = w_t.astype(mxu_dtype)

    # ---- pass 1: per-part partial batch statistics (reduction over M) ------
    part = pl.pallas_call(
        _conv_stats_kernel,
        out_shape=jax.ShapeDtypeStruct((num_parts, ocp, 2), jnp.float32),
        grid=(num_parts, tiles_per_part),
        in_specs=[
            pl.BlockSpec((kk, tm), lambda c, j: (0, c * tiles_per_part + j)),
            pl.BlockSpec((ocp, kk), lambda c, j: (0, 0)),     # weights resident
        ],
        out_specs=pl.BlockSpec((None, ocp, 2), lambda c, j: (c, 0, 0)),
        compiler_params=pltpu.CompilerParams(
            dimension_semantics=("parallel", "arbitrary"),
            vmem_limit_bytes=32 * 1024 * 1024),
    )(patches_t, w_t)

    # Fold partials + gamma/beta into a fused per-channel (scale, shift) and
    # pack PReLU alpha alongside.  Tiny (OC,)-sized XLA ops.
    inv_m = 1.0 / m
    tot = jnp.sum(part, axis=0)                                 # (OCP, 2)
    mean = tot[:oc, 0] * inv_m
    var = jnp.maximum(tot[:oc, 1] * inv_m - mean * mean, 0.0)   # biased var
    scale = gamma.astype(jnp.float32) * jax.lax.rsqrt(var + BN_EPS)
    shift = beta.astype(jnp.float32) - mean * scale
    alpha = jnp.broadcast_to(prelu_alpha.astype(jnp.float32).reshape(-1), (oc,))
    affine = jnp.stack([scale, shift, alpha], axis=1)           # (OC, 3)

    # ---- pass 2: recompute conv + BN + PReLU, lane-dense (OC, M) output ----
    out_mat = pl.pallas_call(
        _conv_bn_prelu_kernel,
        out_shape=jax.ShapeDtypeStruct((oc, m_pad), jnp.float32),
        grid=(tiles,),
        in_specs=[
            pl.BlockSpec((kk, tm), lambda i: (0, i)),
            pl.BlockSpec((ocp, kk), lambda i: (0, 0)),
            pl.BlockSpec((oc, 3), lambda i: (0, 0)),
        ],
        out_specs=pl.BlockSpec((oc, tm), lambda i: (0, i)),
        compiler_params=pltpu.CompilerParams(
            dimension_semantics=("parallel",),
            vmem_limit_bytes=32 * 1024 * 1024),
    )(patches_t, w_t, affine)

    # (OC, M) -> (OC, N, Ho, Wo) -> NCHW
    out = out_mat[:, :m].reshape(oc, n, ho, wo)
    return jnp.transpose(out, (1, 0, 2, 3))


def _reference(x, weight, bias, gamma, beta, alpha, kernel_size, stride):
    pad = kernel_size // 2
    y = jax.lax.conv_general_dilated(
        x, weight, (stride, stride), [(pad, pad), (pad, pad)],
        dimension_numbers=('NCHW', 'OIHW', 'NCHW'))
    y = y + bias[None, :, None, None]
    mean = y.mean(axis=(0, 2, 3), keepdims=True)
    var = ((y - mean) ** 2).mean(axis=(0, 2, 3), keepdims=True)
    y = (y - mean) / jnp.sqrt(var + BN_EPS)
    y = y * gamma[None, :, None, None] + beta[None, :, None, None]
    return jnp.where(y >= 0.0, y, alpha * y)


if __name__ == "__main__":
    # ConvolutionalBlock(in_channels=4, out_channels=8, kernel_size=3,
    #                    stride=1, batch_norm=True, activation='prelu')
    in_channels, out_channels, kernel_size, stride = 4, 8, 3, 1
    n, h, w = 2, 16, 16

    key = jax.random.PRNGKey(0)
    kx, kw_, kb, kg, kbt = jax.random.split(key, 5)
    x = jax.random.normal(kx, (n, in_channels, h, w), dtype=jnp.float32)
    weight = jax.random.normal(
        kw_, (out_channels, in_channels, kernel_size, kernel_size),
        dtype=jnp.float32) * 0.1
    bias = jax.random.normal(kb, (out_channels,), dtype=jnp.float32) * 0.1
    gamma = 1.0 + 0.1 * jax.random.normal(kg, (out_channels,), jnp.float32)
    beta = 0.1 * jax.random.normal(kbt, (out_channels,), jnp.float32)
    prelu_alpha = jnp.full((1,), 0.25, jnp.float32)    # nn.PReLU() init

    ref = _reference(x, weight, bias, gamma, beta, 0.25, kernel_size, stride)

    # f32 MXU path: tight check against the XLA reference (which includes the
    # conv bias -- proving the bias is a no-op under training-mode BN).
    out = convolutional_block(x, weight, bias, gamma, beta, prelu_alpha,
                              kernel_size, stride)
    out = jax.block_until_ready(out)
    assert out.shape == (n, out_channels, h, w)
    assert jnp.allclose(out, ref, atol=1e-4, rtol=1e-4), \
        f"f32 max abs err = {jnp.max(jnp.abs(out - ref))}"

    # bf16 MXU operands (supported on v5e/v6e/v7x), f32 accumulation + f32 BN.
    out_bf16 = convolutional_block(x, weight, bias, gamma, beta, prelu_alpha,
                                   kernel_size, stride,
                                   mxu_dtype=jnp.bfloat16)
    out_bf16 = jax.block_until_ready(out_bf16)
    assert jnp.allclose(out_bf16, ref, atol=5e-2, rtol=5e-2), \
        f"bf16 max abs err = {jnp.max(jnp.abs(out_bf16 - ref))}"

    print("KERNEL_OK")
</pallas_src>

<mosaic_0001>
module attributes {stable_mosaic.version = 11 : i64} {
  func.func @_conv_stats_kernel(%arg0: i32, %arg1: i32, %arg2: memref<36x512xf32, #tpu.memory_space<vmem>>, %arg3: memref<128x36xf32, #tpu.memory_space<vmem>>, %arg4: memref<1x128x2xf32, #tpu.memory_space<vmem>>) attributes {dimension_semantics = [#tpu.dimension_semantics<parallel>, #tpu.dimension_semantics<arbitrary>], iteration_bounds = array<i64: 1, 1>, scalar_prefetch = 0 : i64, scratch_operands = 0 : i64, tpu.core_type = #tpu.core_type<tc>, window_params = [{transform_indices = @transform_0, window_bounds = array<i64: 36, 512>}, {pipeline_mode = #tpu.pipeline_mode<synchronous>, transform_indices = @transform_1, window_bounds = array<i64: 128, 36>}, {transform_indices = @transform_2, window_bounds = array<i64: 1, 128, 2>}]} {
    %c0_i32 = arith.constant 0 : i32
    %0 = arith.cmpi eq, %arg1, %c0_i32 : i32
    %1 = arith.extui %0 : i1 to i32
    %c0_i32_0 = arith.constant 0 : i32
    %2 = arith.cmpi ne, %1, %c0_i32_0 : i32
    scf.if %2 {
      %cst_17 = arith.constant 0.000000e+00 : f32
      %23 = vector.broadcast %cst_17 : f32 to vector<128x2xf32>
      %c0_18 = arith.constant 0 : index
      %c0_19 = arith.constant 0 : index
      %c0_20 = arith.constant 0 : index
      %24 = vector.load %arg4[%c0_18, %c0_19, %c0_20] : memref<1x128x2xf32, #tpu.memory_space<vmem>>, vector<1x128x2xf32>
      %25 = vector.shape_cast %24 : vector<1x128x2xf32> to vector<128x2xf32>
      %26 = vector.shape_cast %23 : vector<128x2xf32> to vector<1x128x2xf32>
      tpu.vector_store %arg4[%c0_18, %c0_19, %c0_20], %26 {strides = array<i32>} : memref<1x128x2xf32, #tpu.memory_space<vmem>>, vector<1x128x2xf32>,
    } else {
    }
    %c0 = arith.constant 0 : index
    %c0_1 = arith.constant 0 : index
    %3 = vector.load %arg3[%c0, %c0_1] : memref<128x36xf32, #tpu.memory_space<vmem>>, vector<128x36xf32>
    %c0_2 = arith.constant 0 : index
    %c0_3 = arith.constant 0 : index
    %4 = vector.load %arg2[%c0_2, %c0_3] : memref<36x512xf32, #tpu.memory_space<vmem>>, vector<36x512xf32>
    %cst = arith.constant dense<0.000000e+00> : vector<128x512xf32>
    %5 = tpu.matmul %3, %4, %cst {dimension_numbers = #tpu.dot_dimension_numbers<[1], [0], [0], [1], [0, 0, 1, 1], [], []>} : vector<128x36xf32>, vector<36x512xf32>, vector<128x512xf32> -> vector<128x512xf32>
    %c0_4 = arith.constant 0 : index
    %c0_5 = arith.constant 0 : index
    %c0_6 = arith.constant 0 : index
    %6 = vector.load %arg4[%c0_4, %c0_5, %c0_6] : memref<1x128x2xf32, #tpu.memory_space<vmem>>, vector<1x128x1xf32>
    %7 = vector.shape_cast %6 : vector<1x128x1xf32> to vector<128x1xf32>
    %cst_7 = arith.constant dense<0.000000e+00> : vector<128xf32>
    %8 = vector.multi_reduction <add>, %5, %cst_7 [1] : vector<128x512xf32> to vector<128xf32>
    %9 = vector.shape_cast %8 : vector<128xf32> to vector<128x1xf32>
    %10 = arith.addf %7, %9 : vector<128x1xf32>
    %c0_8 = arith.constant 0 : index
    %c0_9 = arith.constant 0 : index
    %c0_10 = arith.constant 0 : index
    %11 = vector.load %arg4[%c0_8, %c0_9, %c0_10] : memref<1x128x2xf32, #tpu.memory_space<vmem>>, vector<1x128x1xf32>
    %12 = vector.shape_cast %11 : vector<1x128x1xf32> to vector<128x1xf32>
    %13 = vector.shape_cast %10 : vector<128x1xf32> to vector<1x128x1xf32>
    tpu.vector_store %arg4[%c0_8, %c0_9, %c0_10], %13 {strides = array<i32>} : memref<1x128x2xf32, #tpu.memory_space<vmem>>, vector<1x128x1xf32>,
    %c0_11 = arith.constant 0 : index
    %c0_12 = arith.constant 0 : index
    %c1 = arith.constant 1 : index
    %14 = vector.load %arg4[%c0_11, %c0_12, %c1] : memref<1x128x2xf32, #tpu.memory_space<vmem>>, vector<1x128x1xf32>
    %15 = vector.shape_cast %14 : vector<1x128x1xf32> to vector<128x1xf32>
    %16 = arith.mulf %5, %5 : vector<128x512xf32>
    %cst_13 = arith.constant dense<0.000000e+00> : vector<128xf32>
    %17 = vector.multi_reduction <add>, %16, %cst_13 [1] : vector<128x512xf32> to vector<128xf32>
    %18 = vector.shape_cast %17 : vector<128xf32> to vector<128x1xf32>
    %19 = arith.addf %15, %18 : vector<128x1xf32>
    %c0_14 = arith.constant 0 : index
    %c0_15 = arith.constant 0 : index
    %c1_16 = arith.constant 1 : index
    %20 = vector.load %arg4[%c0_14, %c0_15, %c1_16] : memref<1x128x2xf32, #tpu.memory_space<vmem>>, vector<1x128x1xf32>
    %21 = vector.shape_cast %20 : vector<1x128x1xf32> to vector<128x1xf32>
    %22 = vector.shape_cast %19 : vector<128x1xf32> to vector<1x128x1xf32>
    tpu.vector_store %arg4[%c0_14, %c0_15, %c1_16], %22 {strides = array<i32>} : memref<1x128x2xf32, #tpu.memory_space<vmem>>, vector<1x128x1xf32>,
    return
  }
  func.func @transform_0(%arg0: i32, %arg1: i32) -> (i32, i32) {
    %c1_i32 = arith.constant 1 : i32
    %0 = arith.muli %arg0, %c1_i32 : i32
    %1 = arith.addi %0, %arg1 : i32
    %c0_i32 = arith.constant 0 : i32
    %c0_i32_0 = arith.constant 0 : i32
    return %c0_i32, %1 : i32, i32
  }
  func.func @transform_1(%arg0: i32, %arg1: i32) -> (i32, i32) {
    %c0_i32 = arith.constant 0 : i32
    %c0_i32_0 = arith.constant 0 : i32
    %c0_i32_1 = arith.constant 0 : i32
    return %c0_i32, %c0_i32_0 : i32, i32
  }
  func.func @transform_2(%arg0: i32, %arg1: i32) -> (i32, i32, i32) {
    %c0_i32 = arith.constant 0 : i32
    %c0_i32_0 = arith.constant 0 : i32
    %c0_i32_1 = arith.constant 0 : i32
    return %arg0, %c0_i32, %c0_i32_0 : i32, i32, i32
  }
}

module attributes {stable_mosaic.version = 11 : i64} {
  func.func @_conv_bn_prelu_kernel(%arg0: i32, %arg1: memref<36x512xf32, #tpu.memory_space<vmem>>, %arg2: memref<128x36xf32, #tpu.memory_space<vmem>>, %arg3: memref<8x3xf32, #tpu.memory_space<vmem>>, %arg4: memref<8x512xf32, #tpu.memory_space<vmem>>) attributes {dimension_semantics = [#tpu.dimension_semantics<parallel>], iteration_bounds = array<i64: 1>, scalar_prefetch = 0 : i64, scratch_operands = 0 : i64, tpu.core_type = #tpu.core_type<tc>, window_params = [{transform_indices = @transform_0, window_bounds = array<i64: 36, 512>}, {pipeline_mode = #tpu.pipeline_mode<synchronous>, transform_indices = @transform_1, window_bounds = array<i64: 128, 36>}, {pipeline_mode = #tpu.pipeline_mode<synchronous>, transform_indices = @transform_2, window_bounds = array<i64: 8, 3>}, {transform_indices = @transform_3, window_bounds = array<i64: 8, 512>}]} {
    %c0 = arith.constant 0 : index
    %c0_0 = arith.constant 0 : index
    %0 = vector.load %arg2[%c0, %c0_0] : memref<128x36xf32, #tpu.memory_space<vmem>>, vector<128x36xf32>
    %c0_1 = arith.constant 0 : index
    %c0_2 = arith.constant 0 : index
    %1 = vector.load %arg1[%c0_1, %c0_2] : memref<36x512xf32, #tpu.memory_space<vmem>>, vector<36x512xf32>
    %cst = arith.constant dense<0.000000e+00> : vector<128x512xf32>
    %2 = tpu.matmul %0, %1, %cst {dimension_numbers = #tpu.dot_dimension_numbers<[1], [0], [0], [1], [0, 0, 1, 1], [], []>} : vector<128x36xf32>, vector<36x512xf32>, vector<128x512xf32> -> vector<128x512xf32>
    %3 = vector.extract_strided_slice %2 {offsets = [0, 0], sizes = [8, 512], strides = [1, 1]} : vector<128x512xf32> to vector<8x512xf32>
    %c0_3 = arith.constant 0 : index
    %c0_4 = arith.constant 0 : index
    %4 = vector.load %arg3[%c0_3, %c0_4] : memref<8x3xf32, #tpu.memory_space<vmem>>, vector<8x1xf32>
    %5 = vector.broadcast %4 : vector<8x1xf32> to vector<8x512xf32>
    %6 = arith.mulf %3, %5 : vector<8x512xf32>
    %c0_5 = arith.constant 0 : index
    %c1 = arith.constant 1 : index
    %7 = vector.load %arg3[%c0_5, %c1] : memref<8x3xf32, #tpu.memory_space<vmem>>, vector<8x1xf32>
    %8 = vector.broadcast %7 : vector<8x1xf32> to vector<8x512xf32>
    %9 = arith.addf %6, %8 : vector<8x512xf32>
    %cst_6 = arith.constant 0.000000e+00 : f32
    %10 = vector.broadcast %cst_6 : f32 to vector<8x512xf32>
    %11 = arith.cmpf oge, %9, %10 : vector<8x512xf32>
    %c0_7 = arith.constant 0 : index
    %c2 = arith.constant 2 : index
    %12 = vector.load %arg3[%c0_7, %c2] : memref<8x3xf32, #tpu.memory_space<vmem>>, vector<8x1xf32>
    %13 = vector.broadcast %12 : vector<8x1xf32> to vector<8x512xf32>
    %14 = arith.mulf %13, %9 : vector<8x512xf32>
    %15 = arith.select %11, %9, %14 : vector<8x512xi1>, vector<8x512xf32>
    %c0_8 = arith.constant 0 : index
    %c0_9 = arith.constant 0 : index
    %16 = vector.load %arg4[%c0_8, %c0_9] : memref<8x512xf32, #tpu.memory_space<vmem>>, vector<8x512xf32>
    tpu.vector_store %arg4[%c0_8, %c0_9], %15 {strides = array<i32>} : memref<8x512xf32, #tpu.memory_space<vmem>>, vector<8x512xf32>,
    return
  }
  func.func @transform_0(%arg0: i32) -> (i32, i32) {
    %c0_i32 = arith.constant 0 : i32
    %c0_i32_0 = arith.constant 0 : i32
    return %c0_i32, %arg0 : i32, i32
  }
  func.func @transform_1(%arg0: i32) -> (i32, i32) {
    %c0_i32 = arith.constant 0 : i32
    %c0_i32_0 = arith.constant 0 : i32
    %c0_i32_1 = arith.constant 0 : i32
    return %c0_i32, %c0_i32_0 : i32, i32
  }
  func.func @transform_2(%arg0: i32) -> (i32, i32) {
    %c0_i32 = arith.constant 0 : i32
    %c0_i32_0 = arith.constant 0 : i32
    %c0_i32_1 = arith.constant 0 : i32
    return %c0_i32, %c0_i32_0 : i32, i32
  }
  func.func @transform_3(%arg0: i32) -> (i32, i32) {
    %c0_i32 = arith.constant 0 : i32
    %c0_i32_0 = arith.constant 0 : i32
    return %c0_i32, %arg0 : i32, i32
  }
}

</mosaic_0001>

<llo_original>
// kernel: convolutional_block.3
$region0: #{convolutional_block.3}
  #allocation0 [shape = 'u32[]', space=smem, size = 0x4, offset = 0x4, fixed_abs, tag = 'smem constant byte address 0x4 - core index']
  #allocation1 [shape = 'u32[144,128]{1,0:T(1,128)}', space=vmem, size = 0x12000, scoped, tag = 'internal scratch']
  %s0 = inlined_call_operand.vmem [shape: f32[36,512], index: 0, kind: input, shape index: {}]
  %s1 = inlined_call_operand.vmem [shape: f32[128,36], index: 1, kind: input, shape index: {}]
  %s2 = inlined_call_operand.vmem [shape: f32[8,3], index: 2, kind: input, shape index: {}]
  %s3 = inlined_call_operand.vmem [shape: f32[8,512], index: 3, kind: output, shape index: {}]
  %s4 = sld [smem:[#allocation0]]
  $region22: #{convolutional_block.3} parent=0
    _
  %s6 = ssub.s32 1, %s4
  %s7 = scalar_select 0, %s6, %s4
  // Predicated region
  $region2: #{convolutional_block.3} parent=0 // pred_check
    _
  $region3: #{convolutional_block.3} parent=0 // pred_check_branch
    %9 = sbr.rel (0) target = $region5
  $region4: #{convolutional_block.3} parent=0 // pred_region
    _
  $region5: #{convolutional_block.3} parent=0 // pred_fallthru
    _
  // Predicated region
  $region6: #{convolutional_block.3} parent=0 // pred_check
    _
  $region7: #{convolutional_block.3} parent=0 // pred_check_branch
    %11 = sbr.rel (0) target = $region9
  $region8: #{convolutional_block.3} parent=0 // pred_region
    _
  $region9: #{convolutional_block.3} parent=0 // pred_fallthru
    _
  // Predicated region
  $region10: #{convolutional_block.3} parent=0 // pred_check
    _
  $region11: #{convolutional_block.3} parent=0 // pred_check_branch
    %13 = sbr.rel (0) target = $region13
  $region12: #{convolutional_block.3} parent=0 // pred_region
    _
  $region13: #{convolutional_block.3} parent=0 // pred_fallthru
    _
  %v14 = vld [vmem:[%s1] sm:$0xff]
  %v15 = vld [vmem:[%s1 + $0x8] sm:$0xff]
  %v16 = vld [vmem:[%s1 + $0x10] sm:$0xff]
  %v17 = vld [vmem:[%s1 + $0x18] sm:$0xff]
  %v18 = vld [vmem:[%s1 + $0x20] sm:$0xff]
  %v19 = vld [vmem:[%s1 + $0x28] sm:$0xff]
  %v20 = vld [vmem:[%s1 + $0x30] sm:$0xff]
  %v21 = vld [vmem:[%s1 + $0x38] sm:$0xff]
  %v22 = vld [vmem:[%s1 + $0x40] sm:$0xff]
  %v23 = vld [vmem:[%s1 + $0x48] sm:$0xff]
  %v24 = vld [vmem:[%s1 + $0x50] sm:$0xff]
  %v25 = vld [vmem:[%s1 + $0x58] sm:$0xff]
  %v26 = vld [vmem:[%s1 + $0x60] sm:$0xff]
  %v27 = vld [vmem:[%s1 + $0x68] sm:$0xff]
  %v28 = vld [vmem:[%s1 + $0x70] sm:$0xff]
  %v29 = vld [vmem:[%s1 + $0x78] sm:$0xff]
  %v30 = vld [vmem:[%s0] sm:$0xff]
  %v31 = vld [vmem:[%s0 + $0x8] sm:$0xff]
  %v32 = vld [vmem:[%s0 + $0x10] sm:$0xff]
  %v33 = vld [vmem:[%s0 + $0x18] sm:$0xff]
  %v34 = vld [vmem:[%s0 + $0x20] sm:$0xff]
  %v35 = vld [vmem:[%s0 + $0x28] sm:$0xff]
  %v36 = vld [vmem:[%s0 + $0x30] sm:$0xff]
  %v37 = vld [vmem:[%s0 + $0x38] sm:$0xff]
  %v38 = vld [vmem:[%s0 + $0x40] sm:$0xff]
  %v39 = vld [vmem:[%s0 + $0x48] sm:$0xff]
  %v40 = vld [vmem:[%s0 + $0x50] sm:$0xff]
  %v41 = vld [vmem:[%s0 + $0x58] sm:$0xff]
  %v42 = vld [vmem:[%s0 + $0x60] sm:$0xff]
  %v43 = vld [vmem:[%s0 + $0x68] sm:$0xff]
  %v44 = vld [vmem:[%s0 + $0x70] sm:$0xff]
  %v45 = vld [vmem:[%s0 + $0x78] sm:$0xff]
  %v46 = vld [vmem:[%s0 + $0x80] sm:$0xf]
  %v47 = vld [vmem:[%s0 + $0x88] sm:$0xf]
  %v48 = vld [vmem:[%s0 + $0x90] sm:$0xf]
  %v49 = vld [vmem:[%s0 + $0x98] sm:$0xf]
  %vm50 = vcmask 293888
  %v52 = vsel %vm50, %v14, 0
  %v55 = vsel %vm50, %v15, 0
  %v58 = vsel %vm50, %v16, 0
  %v61 = vsel %vm50, %v17, 0
  %v64 = vsel %vm50, %v18, 0
  %v67 = vsel %vm50, %v19, 0
  %v70 = vsel %vm50, %v20, 0
  %v73 = vsel %vm50, %v21, 0
  %v76 = vsel %vm50, %v22, 0
  %v79 = vsel %vm50, %v23, 0
  %v82 = vsel %vm50, %v24, 0
  %v85 = vsel %vm50, %v25, 0
  %v88 = vsel %vm50, %v26, 0
  %v91 = vsel %vm50, %v27, 0
  %v94 = vsel %vm50, %v28, 0
  %v97 = vsel %vm50, %v29, 0
  %vm99 = vcmask 1043456
  %v101 = vsel %vm99, %v46, 0
  %v104 = vsel %vm99, %v47, 0
  %v107 = vsel %vm99, %v48, 0
  %v110 = vsel %vm99, %v49, 0
  %112 = vmatprep.subr.mxu0 %v31
  %113 = vmatpush1.msra.mxu0 %v30
  %114 = vmatprep.subr.mxu0 %v35
  %115 = vmatpush1.msra.mxu0 %v34
  %116 = vmatprep.subr.mxu0 %v39
  %117 = vmatpush1.msra.mxu0 %v38
  %118 = vmatprep.subr.mxu0 %v43
  %119 = vmatpush1.msra.mxu0 %v42
  %120 = vmatprep.subr.mxu0 %v104
  %121 = vmatpush1.msra.mxu0 %v101
  %122 = vmatprep.subr.mxu0 0.0
  %123 = vmatpush1.msra.mxu0 0.0
  %124 = vmatprep.subr.mxu0 0.0
  %125 = vmatpush1.msra.mxu0 0.0
  %126 = vmatprep.subr.mxu0 0.0
  %127 = vmatpush1.msra.mxu0 0.0
  %128 = vmatprep.subr.mxu0 0.0
  %129 = vmatpush1.msra.mxu0 0.0
  %130 = vmatprep.subr.mxu0 0.0
  %131 = vmatpush1.msra.mxu0 0.0
  %132 = vmatprep.subr.mxu0 0.0
  %133 = vmatpush1.msra.mxu0 0.0
  %134 = vmatprep.subr.mxu0 0.0
  %135 = vmatpush1.msra.mxu0 0.0
  %136 = vmatprep.subr.mxu0 0.0
  %137 = vmatpush1.msra.mxu0 0.0
  %138 = vmatprep.subr.mxu0 0.0
  %139 = vmatpush1.msra.mxu0 0.0
  %140 = vmatprep.subr.mxu0 0.0
  %141 = vmatpush1.msra.mxu0 0.0
  %142 = vmatprep.subr.mxu0 0.0
  %143 = vmatpush1.msra.mxu0 0.0
  %144 = vmatprep.subr.mxu0 0.0
  %145 = vmatpush1.msra.mxu0 0.0
  %146 = vmatprep.subr.mxu0 0.0
  %147 = vmatpush1.msra.mxu0 0.0
  %148 = vmatprep.subr.mxu0 0.0
  %149 = vmatpush1.msra.mxu0 0.0
  %150 = vmatprep.subr.mxu0 0.0
  %151 = vmatpush1.msra.mxu0 0.0
  %152 = vmatprep.subr.mxu0 0.0
  %153 = vmatpush1.msra.mxu0 0.0
  %154 = vmatprep.subr.mxu0 0.0
  %155 = vmatpush1.msra.mxu0 0.0
  %156 = vmatprep.subr.mxu0 0.0
  %157 = vmatpush1.msra.mxu0 0.0
  %158 = vmatprep.subr.mxu0 0.0
  %159 = vmatpush1.msra.mxu0 0.0
  %160 = vmatprep.subr.mxu0 0.0
  %161 = vmatpush1.msra.mxu0 0.0
  %162 = vmatprep.subr.mxu0 0.0
  %163 = vmatpush1.msra.mxu0 0.0
  %164 = vmatprep.subr.mxu0 0.0
  %165 = vmatpush1.msra.mxu0 0.0
  %166 = vmatprep.subr.mxu0 0.0
  %167 = vmatpush1.msra.mxu0 0.0
  %168 = vmatprep.subr.mxu0 0.0
  %169 = vmatpush1.msra.mxu0 0.0
  %170 = vmatprep.subr.mxu0 0.0
  %171 = vmatpush1.msra.mxu0 0.0
  %172 = vmatprep.subr.mxu0 0.0
  %173 = vmatpush1.msra.mxu0 0.0
  %174 = vmatprep.subr.mxu0 0.0
  %175 = vmatpush1.msra.mxu0 0.0
  %176 = vmatprep.mubr.f32.mxu0 0.0
  %177 = vmatmul.mubr.f32.gmra.mrb[0].mxu0 %v52
  %v178 = vpop.f32.mrb[0].mxu0
  %v179 = vadd.f32 0.0, %v178
  %v180 = vpop.f32.mrb[0].mxu0
  %v181 = vadd.f32 0.0, %v180
  %182 = vmatprep.mubr.f32.mxu0 0.0
  %183 = vmatmul.mubr.f32.gmra.mrb[0].mxu0 %v55
  %v184 = vpop.f32.mrb[0].mxu0
  %v185 = vpop.f32.mrb[0].mxu0
  %186 = vmatprep.mubr.f32.mxu0 0.0
  %187 = vmatmul.mubr.f32.gmra.mrb[0].mxu0 %v58
  %v188 = vpop.f32.mrb[0].mxu0
  %v189 = vpop.f32.mrb[0].mxu0
  %190 = vmatprep.mubr.f32.mxu0 0.0
  %191 = vmatmul.mubr.f32.gmra.mrb[0].mxu0 %v61
  %v192 = vpop.f32.mrb[0].mxu0
  %v193 = vpop.f32.mrb[0].mxu0
  %194 = vmatprep.mubr.f32.mxu0 0.0
  %195 = vmatmul.mubr.f32.gmra.mrb[0].mxu0 %v64
  %v196 = vpop.f32.mrb[0].mxu0
  %v197 = vpop.f32.mrb[0].mxu0
  %198 = vmatprep.mubr.f32.mxu0 0.0
  %199 = vmatmul.mubr.f32.gmra.mrb[0].mxu0 %v67
  %v200 = vpop.f32.mrb[0].mxu0
  %v201 = vpop.f32.mrb[0].mxu0
  %202 = vmatprep.mubr.f32.mxu0 0.0
  %203 = vmatmul.mubr.f32.gmra.mrb[0].mxu0 %v70
  %v204 = vpop.f32.mrb[0].mxu0
  %v205 = vpop.f32.mrb[0].mxu0
  %206 = vmatprep.mubr.f32.mxu0 0.0
  %207 = vmatmul.mubr.f32.gmra.mrb[0].mxu0 %v73
  %v208 = vpop.f32.mrb[0].mxu0
  %v209 = vpop.f32.mrb[0].mxu0
  %210 = vmatprep.mubr.f32.mxu0 0.0
  %211 = vmatmul.mubr.f32.gmra.mrb[0].mxu0 %v76
  %v212 = vpop.f32.mrb[0].mxu0
  %v213 = vpop.f32.mrb[0].mxu0
  %214 = vmatprep.mubr.f32.mxu0 0.0
  %215 = vmatmul.mubr.f32.gmra.mrb[0].mxu0 %v79
  %v216 = vpop.f32.mrb[0].mxu0
  %v217 = vpop.f32.mrb[0].mxu0
  %218 = vmatprep.mubr.f32.mxu0 0.0
  %219 = vmatmul.mubr.f32.gmra.mrb[0].mxu0 %v82
  %v220 = vpop.f32.mrb[0].mxu0
  %v221 = vpop.f32.mrb[0].mxu0
  %222 = vmatprep.mubr.f32.mxu0 0.0
  %223 = vmatmul.mubr.f32.gmra.mrb[0].mxu0 %v85
  %v224 = vpop.f32.mrb[0].mxu0
  %v225 = vpop.f32.mrb[0].mxu0
  %226 = vmatprep.mubr.f32.mxu0 0.0
  %227 = vmatmul.mubr.f32.gmra.mrb[0].mxu0 %v88
  %v228 = vpop.f32.mrb[0].mxu0
  %v229 = vpop.f32.mrb[0].mxu0
  %230 = vmatprep.mubr.f32.mxu0 0.0
  %231 = vmatmul.mubr.f32.gmra.mrb[0].mxu0 %v91
  %v232 = vpop.f32.mrb[0].mxu0
  %v233 = vpop.f32.mrb[0].mxu0
  %234 = vmatprep.mubr.f32.mxu0 0.0
  %235 = vmatmul.mubr.f32.gmra.mrb[0].mxu0 %v94
  %v236 = vpop.f32.mrb[0].mxu0
  %v237 = vpop.f32.mrb[0].mxu0
  %238 = vmatprep.mubr.f32.mxu0 0.0
  %239 = vmatmul.mubr.f32.gmra.mrb[0].mxu0 %v97
  %v240 = vpop.f32.mrb[0].mxu0
  %v241 = vpop.f32.mrb[0].mxu0
  %242 = vdwg.mxu0
  %243 = vmatprep.subr.mxu0 %v33
  %244 = vmatpush1.msra.mxu0 %v32
  %245 = vmatprep.subr.mxu0 %v37
  %246 = vmatpush1.msra.mxu0 %v36
  %247 = vmatprep.subr.mxu0 %v41
  %248 = vmatpush1.msra.mxu0 %v40
  %249 = vmatprep.subr.mxu0 %v45
  %250 = vmatpush1.msra.mxu0 %v44
  %251 = vmatprep.subr.mxu0 %v110
  %252 = vmatpush1.msra.mxu0 %v107
  %253 = vmatprep.subr.mxu0 0.0
  %254 = vmatpush1.msra.mxu0 0.0
  %255 = vmatprep.subr.mxu0 0.0
  %256 = vmatpush1.msra.mxu0 0.0
  %257 = vmatprep.subr.mxu0 0.0
  %258 = vmatpush1.msra.mxu0 0.0
  %259 = vmatprep.subr.mxu0 0.0
  %260 = vmatpush1.msra.mxu0 0.0
  %261 = vmatprep.subr.mxu0 0.0
  %262 = vmatpush1.msra.mxu0 0.0
  %263 = vmatprep.subr.mxu0 0.0
  %264 = vmatpush1.msra.mxu0 0.0
  %265 = vmatprep.subr.mxu0 0.0
  %266 = vmatpush1.msra.mxu0 0.0
  %267 = vmatprep.subr.mxu0 0.0
  %268 = vmatpush1.msra.mxu0 0.0
  %269 = vmatprep.subr.mxu0 0.0
  %270 = vmatpush1.msra.mxu0 0.0
  %271 = vmatprep.subr.mxu0 0.0
  %272 = vmatpush1.msra.mxu0 0.0
  %273 = vmatprep.subr.mxu0 0.0
  %274 = vmatpush1.msra.mxu0 0.0
  %275 = vmatprep.subr.mxu0 0.0
  %276 = vmatpush1.msra.mxu0 0.0
  %277 = vmatprep.subr.mxu0 0.0
  %278 = vmatpush1.msra.mxu0 0.0
  %279 = vmatprep.subr.mxu0 0.0
  %280 = vmatpush1.msra.mxu0 0.0
  %281 = vmatprep.subr.mxu0 0.0
  %282 = vmatpush1.msra.mxu0 0.0
  %283 = vmatprep.subr.mxu0 0.0
  %284 = vmatpush1.msra.mxu0 0.0
  %285 = vmatprep.subr.mxu0 0.0
  %286 = vmatpush1.msra.mxu0 0.0
  %287 = vmatprep.subr.mxu0 0.0
  %288 = vmatpush1.msra.mxu0 0.0
  %289 = vmatprep.subr.mxu0 0.0
  %290 = vmatpush1.msra.mxu0 0.0
  %291 = vmatprep.subr.mxu0 0.0
  %292 = vmatpush1.msra.mxu0 0.0
  %293 = vmatprep.subr.mxu0 0.0
  %294 = vmatpush1.msra.mxu0 0.0
  %295 = vmatprep.subr.mxu0 0.0
  %296 = vmatpush1.msra.mxu0 0.0
  %297 = vmatprep.subr.mxu0 0.0
  %298 = vmatpush1.msra.mxu0 0.0
  %299 = vmatprep.subr.mxu0 0.0
  %300 = vmatpush1.msra.mxu0 0.0
  %301 = vmatprep.subr.mxu0 0.0
  %302 = vmatpush1.msra.mxu0 0.0
  %303 = vmatprep.subr.mxu0 0.0
  %304 = vmatpush1.msra.mxu0 0.0
  %305 = vmatprep.subr.mxu0 0.0
  %306 = vmatpush1.msra.mxu0 0.0
  %307 = vmatprep.mubr.f32.mxu0 0.0
  %308 = vmatmul.mubr.f32.gmra.mrb[0].mxu0 %v52
  %v309 = vpop.f32.mrb[0].mxu0
  %v310 = vadd.f32 0.0, %v309
  %v311 = vpop.f32.mrb[0].mxu0
  %v312 = vadd.f32 0.0, %v311
  %313 = vmatprep.mubr.f32.mxu0 0.0
  %314 = vmatmul.mubr.f32.gmra.mrb[0].mxu0 %v55
  %v315 = vpop.f32.mrb[0].mxu0
  %v316 = vpop.f32.mrb[0].mxu0
  %317 = vmatprep.mubr.f32.mxu0 0.0
  %318 = vmatmul.mubr.f32.gmra.mrb[0].mxu0 %v58
  %v319 = vpop.f32.mrb[0].mxu0
  %v320 = vpop.f32.mrb[0].mxu0
  %321 = vmatprep.mubr.f32.mxu0 0.0
  %322 = vmatmul.mubr.f32.gmra.mrb[0].mxu0 %v61
  %v323 = vpop.f32.mrb[0].mxu0
  %v324 = vpop.f32.mrb[0].mxu0
  %325 = vmatprep.mubr.f32.mxu0 0.0
  %326 = vmatmul.mubr.f32.gmra.mrb[0].mxu0 %v64
  %v327 = vpop.f32.mrb[0].mxu0
  %v328 = vpop.f32.mrb[0].mxu0
  %329 = vmatprep.mubr.f32.mxu0 0.0
  %330 = vmatmul.mubr.f32.gmra.mrb[0].mxu0 %v67
  %v331 = vpop.f32.mrb[0].mxu0
  %v332 = vpop.f32.mrb[0].mxu0
  %333 = vmatprep.mubr.f32.mxu0 0.0
  %334 = vmatmul.mubr.f32.gmra.mrb[0].mxu0 %v70
  %v335 = vpop.f32.mrb[0].mxu0
  %v336 = vpop.f32.mrb[0].mxu0
  %337 = vmatprep.mubr.f32.mxu0 0.0
  %338 = vmatmul.mubr.f32.gmra.mrb[0].mxu0 %v73
  %v339 = vpop.f32.mrb[0].mxu0
  %v340 = vpop.f32.mrb[0].mxu0
  %341 = vmatprep.mubr.f32.mxu0 0.0
  %342 = vmatmul.mubr.f32.gmra.mrb[0].mxu0 %v76
  %v343 = vpop.f32.mrb[0].mxu0
  %v344 = vpop.f32.mrb[0].mxu0
  %345 = vmatprep.mubr.f32.mxu0 0.0
  %346 = vmatmul.mubr.f32.gmra.mrb[0].mxu0 %v79
  %v347 = vpop.f32.mrb[0].mxu0
  %v348 = vpop.f32.mrb[0].mxu0
  %349 = vmatprep.mubr.f32.mxu0 0.0
  %350 = vmatmul.mubr.f32.gmra.mrb[0].mxu0 %v82
  %v351 = vpop.f32.mrb[0].mxu0
  %v352 = vpop.f32.mrb[0].mxu0
  %353 = vmatprep.mubr.f32.mxu0 0.0
  %354 = vmatmul.mubr.f32.gmra.mrb[0].mxu0 %v85
  %v355 = vpop.f32.mrb[0].mxu0
  %v356 = vpop.f32.mrb[0].mxu0
  %357 = vmatprep.mubr.f32.mxu0 0.0
  %358 = vmatmul.mubr.f32.gmra.mrb[0].mxu0 %v88
  %v359 = vpop.f32.mrb[0].mxu0
  %v360 = vpop.f32.mrb[0].mxu0
  %361 = vmatprep.mubr.f32.mxu0 0.0
  %362 = vmatmul.mubr.f32.gmra.mrb[0].mxu0 %v91
  %v363 = vpop.f32.mrb[0].mxu0
  %v364 = vpop.f32.mrb[0].mxu0
  %365 = vmatprep.mubr.f32.mxu0 0.0
  %366 = vmatmul.mubr.f32.gmra.mrb[0].mxu0 %v94
  %v367 = vpop.f32.mrb[0].mxu0
  %v368 = vpop.f32.mrb[0].mxu0
  %369 = vmatprep.mubr.f32.mxu0 0.0
  %370 = vmatmul.mubr.f32.gmra.mrb[0].mxu0 %v97
  %v371 = vpop.f32.mrb[0].mxu0
  %v372 = vpop.f32.mrb[0].mxu0
  %373 = vdwg.mxu0
  %v374 = vld [vmem:[%s2] sm:$0xff]
  %376 = vset.pattern.permute.xlu0 0
  %377 = vperm.xlu0 %376, %v374
  %v378 = vpop.permute.xlu0 %377
  %v380 = vmul.f32 %v179, %v378
  %v381 = vmul.f32 %v181, %v378
  %v382 = vmul.f32 %v310, %v378
  %v383 = vmul.f32 %v312, %v378
  %384 = vset.pattern.permute.xlu0 1
  %385 = vperm.xlu0 %384, %v374
  %v386 = vpop.permute.xlu0 %385
  %v388 = vadd.f32 %v380, %v386
  %v389 = vadd.f32 %v381, %v386
  %v390 = vadd.f32 %v382, %v386
  %v391 = vadd.f32 %v383, %v386
  %vm392 = vcmp.ge.f32.partialorder %v388, 0.0
  %vm393 = vcmp.ge.f32.partialorder %v389, 0.0
  %vm394 = vcmp.ge.f32.partialorder %v390, 0.0
  %vm395 = vcmp.ge.f32.partialorder %v391, 0.0
  %396 = vset.pattern.permute.xlu0 2
  %397 = vperm.xlu0 %396, %v374
  %v398 = vpop.permute.xlu0 %397
  %v400 = vmul.f32 %v398, %v388
  %v401 = vmul.f32 %v398, %v389
  %v402 = vmul.f32 %v398, %v390
  %v403 = vmul.f32 %v398, %v391
  %v404 = vsel %vm392, %v388, %v400
  %v405 = vsel %vm393, %v389, %v401
  %v406 = vsel %vm394, %v390, %v402
  %v407 = vsel %vm395, %v391, %v403
  %408 = vst [vmem:[%s3] sm:$0xff] %v404
  %409 = vst [vmem:[%s3 + $0x8] sm:$0xff] %v405
  %410 = vst [vmem:[%s3 + $0x10] sm:$0xff] %v406
  %411 = vst [vmem:[%s3 + $0x18] sm:$0xff] %v407
  // Predicated region
  $region14: #{convolutional_block.3} parent=0 // pred_check
    _
  $region15: #{convolutional_block.3} parent=0 // pred_check_branch
    %413 = sbr.rel (0) target = $region17
  $region16: #{convolutional_block.3} parent=0 // pred_region
    _
  $region17: #{convolutional_block.3} parent=0 // pred_fallthru
    _
  // Predicated region
  $region18: #{convolutional_block.3} parent=0 // pred_check
    _
  $region19: #{convolutional_block.3} parent=0 // pred_check_branch
    %415 = sbr.rel (0) target = $region21
  $region20: #{convolutional_block.3} parent=0 // pred_region
    _
  $region21: #{convolutional_block.3} parent=0 // pred_fallthru
    _

// kernel: convolutional_block.2
$region0: #{convolutional_block.2}
  #allocation0 [shape = 'u32[]', space=smem, size = 0x4, offset = 0x4, fixed_abs, tag = 'smem constant byte address 0x4 - core index']
  #allocation1 [shape = 'u32[144,128]{1,0:T(1,128)}', space=vmem, size = 0x12000, scoped, tag = 'internal scratch']
  %s0 = inlined_call_operand.vmem [shape: f32[36,512], index: 0, kind: input, shape index: {}]
  %s1 = inlined_call_operand.vmem [shape: f32[128,36], index: 1, kind: input, shape index: {}]
  %s2 = inlined_call_operand.vmem [shape: f32[1,128,2], index: 2, kind: output, shape index: {}]
  %s3 = sld [smem:[#allocation0]]
  $region22: #{convolutional_block.2} parent=0
    _
  %s5 = ssub.s32 1, %s3
  %s6 = scalar_select 0, %s5, %s3
  // Predicated region
  $region2: #{convolutional_block.2} parent=0 // pred_check
    _
  $region3: #{convolutional_block.2} parent=0 // pred_check_branch
    %8 = sbr.rel (0) target = $region5
  $region4: #{convolutional_block.2} parent=0 // pred_region
    %s9 = sadd.s32 0, 0
    %s10 = smul.u32 4, %s9
    %p11 = scmp.lt.s32.totalorder %s10, 3
    %s12 = scalar_select %p11, %s10, 3
    %s13 = smul.addr %s12, 8
    %s14 = scalar_lea.vmem %s0, %s13
    %s15 = sadd.s32 0, 0
    %s16 = smul.u32 4, %s15
  $region5: #{convolutional_block.2} parent=0 // pred_fallthru
    _
  // Predicated region
  $region6: #{convolutional_block.2} parent=0 // pred_check
    _
  $region7: #{convolutional_block.2} parent=0 // pred_check_branch
    %18 = sbr.rel (0) target = $region9
  $region8: #{convolutional_block.2} parent=0 // pred_region
    _
  $region9: #{convolutional_block.2} parent=0 // pred_fallthru
    _
  %s19 = sadd.s32 0, 0
  %s20 = smul.u32 4, %s19
  %p21 = scmp.lt.s32.totalorder %s20, 3
  %s22 = scalar_select %p21, %s20, 3
  %s23 = smul.addr %s22, 8
  %s24 = scalar_lea.vmem %s0, %s23
  %s25 = sadd.s32 0, 0
  %s26 = smul.u32 4, %s25
  %p27 = scmp.lt.s32.totalorder %s26, 3
  %s28 = scalar_select %p27, %s26, 3
  %s29 = smul.addr %s28, 8
  %s30 = scalar_lea.vmem %s0, %s29
  %s31 = sadd.s32 0, 0
  %s32 = smul.u32 4, %s31
  %p33 = scmp.eq.s32.totalorder 0, 0
  // Predicated region
  $region10: #{convolutional_block.2} parent=0 // pred_check
    %p34 = pneg %p33
  $region11: #{convolutional_block.2} parent=0 // pred_check_branch
    %36 = sbr.rel (%p34) target = $region13
  $region12: #{convolutional_block.2} parent=0 // pred_region
    %vm37 = vcmask 15360
    %38 = vst.msk [vmem:[%s2] sm:$0xff] %vm37, 0.0
    %39 = vst.msk [vmem:[%s2 + $0x8] sm:$0xff] %vm37, 0.0
    %40 = vst.msk [vmem:[%s2 + $0x10] sm:$0xff] %vm37, 0.0
    %41 = vst.msk [vmem:[%s2 + $0x18] sm:$0xff] %vm37, 0.0
    %42 = vst.msk [vmem:[%s2 + $0x20] sm:$0xff] %vm37, 0.0
    %43 = vst.msk [vmem:[%s2 + $0x28] sm:$0xff] %vm37, 0.0
    %44 = vst.msk [vmem:[%s2 + $0x30] sm:$0xff] %vm37, 0.0
    %45 = vst.msk [vmem:[%s2 + $0x38] sm:$0xff] %vm37, 0.0
    %46 = vst.msk [vmem:[%s2 + $0x40] sm:$0xff] %vm37, 0.0
    %47 = vst.msk [vmem:[%s2 + $0x48] sm:$0xff] %vm37, 0.0
    %48 = vst.msk [vmem:[%s2 + $0x50] sm:$0xff] %vm37, 0.0
    %49 = vst.msk [vmem:[%s2 + $0x58] sm:$0xff] %vm37, 0.0
    %50 = vst.msk [vmem:[%s2 + $0x60] sm:$0xff] %vm37, 0.0
    %51 = vst.msk [vmem:[%s2 + $0x68] sm:$0xff] %vm37, 0.0
    %52 = vst.msk [vmem:[%s2 + $0x70] sm:$0xff] %vm37, 0.0
    %53 = vst.msk [vmem:[%s2 + $0x78] sm:$0xff] %vm37, 0.0
  $region13: #{convolutional_block.2} parent=0 // pred_fallthru
    _
  %v54 = vld [vmem:[%s1] sm:$0xff]
  %v55 = vld [vmem:[%s1 + $0x8] sm:$0xff]
  %v56 = vld [vmem:[%s1 + $0x10] sm:$0xff]
  %v57 = vld [vmem:[%s1 + $0x18] sm:$0xff]
  %v58 = vld [vmem:[%s1 + $0x20] sm:$0xff]
  %v59 = vld [vmem:[%s1 + $0x28] sm:$0xff]
  %v60 = vld [vmem:[%s1 + $0x30] sm:$0xff]
  %v61 = vld [vmem:[%s1 + $0x38] sm:$0xff]
  %v62 = vld [vmem:[%s1 + $0x40] sm:$0xff]
  %v63 = vld [vmem:[%s1 + $0x48] sm:$0xff]
  %v64 = vld [vmem:[%s1 + $0x50] sm:$0xff]
  %v65 = vld [vmem:[%s1 + $0x58] sm:$0xff]
  %v66 = vld [vmem:[%s1 + $0x60] sm:$0xff]
  %v67 = vld [vmem:[%s1 + $0x68] sm:$0xff]
  %v68 = vld [vmem:[%s1 + $0x70] sm:$0xff]
  %v69 = vld [vmem:[%s1 + $0x78] sm:$0xff]
  %v70 = vld [vmem:[%s30] sm:$0xff]
  %v71 = vld [vmem:[%s30 + $0x8] sm:$0xff]
  %v72 = vld [vmem:[%s30 + $0x10] sm:$0xff]
  %v73 = vld [vmem:[%s30 + $0x18] sm:$0xff]
  %v74 = vld [vmem:[%s30 + $0x20] sm:$0xff]
  %v75 = vld [vmem:[%s30 + $0x28] sm:$0xff]
  %v76 = vld [vmem:[%s30 + $0x30] sm:$0xff]
  %v77 = vld [vmem:[%s30 + $0x38] sm:$0xff]
  %v78 = vld [vmem:[%s30 + $0x40] sm:$0xff]
  %v79 = vld [vmem:[%s30 + $0x48] sm:$0xff]
  %v80 = vld [vmem:[%s30 + $0x50] sm:$0xff]
  %v81 = vld [vmem:[%s30 + $0x58] sm:$0xff]
  %v82 = vld [vmem:[%s30 + $0x60] sm:$0xff]
  %v83 = vld [vmem:[%s30 + $0x68] sm:$0xff]
  %v84 = vld [vmem:[%s30 + $0x70] sm:$0xff]
  %v85 = vld [vmem:[%s30 + $0x78] sm:$0xff]
  %v86 = vld [vmem:[%s30 + $0x80] sm:$0xf]
  %v87 = vld [vmem:[%s30 + $0x88] sm:$0xf]
  %v88 = vld [vmem:[%s30 + $0x90] sm:$0xf]
  %v89 = vld [vmem:[%s30 + $0x98] sm:$0xf]
  %vm90 = vcmask 293888
  %v92 = vsel %vm90, %v54, 0
  %v95 = vsel %vm90, %v55, 0
  %v98 = vsel %vm90, %v56, 0
  %v101 = vsel %vm90, %v57, 0
  %v104 = vsel %vm90, %v58, 0
  %v107 = vsel %vm90, %v59, 0
  %v110 = vsel %vm90, %v60, 0
  %v113 = vsel %vm90, %v61, 0
  %v116 = vsel %vm90, %v62, 0
  %v119 = vsel %vm90, %v63, 0
  %v122 = vsel %vm90, %v64, 0
  %v125 = vsel %vm90, %v65, 0
  %v128 = vsel %vm90, %v66, 0
  %v131 = vsel %vm90, %v67, 0
  %v134 = vsel %vm90, %v68, 0
  %v137 = vsel %vm90, %v69, 0
  %vm139 = vcmask 1043456
  %v141 = vsel %vm139, %v86, 0
  %v144 = vsel %vm139, %v87, 0
  %v147 = vsel %vm139, %v88, 0
  %v150 = vsel %vm139, %v89, 0
  %152 = vmatprep.subr.mxu0 %v71
  %153 = vmatpush1.msra.mxu0 %v70
  %154 = vmatprep.subr.mxu0 %v75
  %155 = vmatpush1.msra.mxu0 %v74
  %156 = vmatprep.subr.mxu0 %v79
  %157 = vmatpush1.msra.mxu0 %v78
  %158 = vmatprep.subr.mxu0 %v83
  %159 = vmatpush1.msra.mxu0 %v82
  %160 = vmatprep.subr.mxu0 %v144
  %161 = vmatpush1.msra.mxu0 %v141
  %162 = vmatprep.subr.mxu0 0.0
  %163 = vmatpush1.msra.mxu0 0.0
  %164 = vmatprep.subr.mxu0 0.0
  %165 = vmatpush1.msra.mxu0 0.0
  %166 = vmatprep.subr.mxu0 0.0
  %167 = vmatpush1.msra.mxu0 0.0
  %168 = vmatprep.subr.mxu0 0.0
  %169 = vmatpush1.msra.mxu0 0.0
  %170 = vmatprep.subr.mxu0 0.0
  %171 = vmatpush1.msra.mxu0 0.0
  %172 = vmatprep.subr.mxu0 0.0
  %173 = vmatpush1.msra.mxu0 0.0
  %174 = vmatprep.subr.mxu0 0.0
  %175 = vmatpush1.msra.mxu0 0.0
  %176 = vmatprep.subr.mxu0 0.0
  %177 = vmatpush1.msra.mxu0 0.0
  %178 = vmatprep.subr.mxu0 0.0
  %179 = vmatpush1.msra.mxu0 0.0
  %180 = vmatprep.subr.mxu0 0.0
  %181 = vmatpush1.msra.mxu0 0.0
  %182 = vmatprep.subr.mxu0 0.0
  %183 = vmatpush1.msra.mxu0 0.0
  %184 = vmatprep.subr.mxu0 0.0
  %185 = vmatpush1.msra.mxu0 0.0
  %186 = vmatprep.subr.mxu0 0.0
  %187 = vmatpush1.msra.mxu0 0.0
  %188 = vmatprep.subr.mxu0 0.0
  %189 = vmatpush1.msra.mxu0 0.0
  %190 = vmatprep.subr.mxu0 0.0
  %191 = vmatpush1.msra.mxu0 0.0
  %192 = vmatprep.subr.mxu0 0.0
  %193 = vmatpush1.msra.mxu0 0.0
  %194 = vmatprep.subr.mxu0 0.0
  %195 = vmatpush1.msra.mxu0 0.0
  %196 = vmatprep.subr.mxu0 0.0
  %197 = vmatpush1.msra.mxu0 0.0
  %198 = vmatprep.subr.mxu0 0.0
  %199 = vmatpush1.msra.mxu0 0.0
  %200 = vmatprep.subr.mxu0 0.0
  %201 = vmatpush1.msra.mxu0 0.0
  %202 = vmatprep.subr.mxu0 0.0
  %203 = vmatpush1.msra.mxu0 0.0
  %204 = vmatprep.subr.mxu0 0.0
  %205 = vmatpush1.msra.mxu0 0.0
  %206 = vmatprep.subr.mxu0 0.0
  %207 = vmatpush1.msra.mxu0 0.0
  %208 = vmatprep.subr.mxu0 0.0
  %209 = vmatpush1.msra.mxu0 0.0
  %210 = vmatprep.subr.mxu0 0.0
  %211 = vmatpush1.msra.mxu0 0.0
  %212 = vmatprep.subr.mxu0 0.0
  %213 = vmatpush1.msra.mxu0 0.0
  %214 = vmatprep.subr.mxu0 0.0
  %215 = vmatpush1.msra.mxu0 0.0
  %216 = vmatprep.mubr.f32.mxu0 0.0
  %217 = vmatmul.mubr.f32.gmra.mrb[0].mxu0 %v92
  %v218 = vpop.f32.mrb[0].mxu0
  %v219 = vadd.f32 0.0, %v218
  %v220 = vpop.f32.mrb[0].mxu0
  %v221 = vadd.f32 0.0, %v220
  %222 = vmatprep.mubr.f32.mxu0 0.0
  %223 = vmatmul.mubr.f32.gmra.mrb[0].mxu0 %v95
  %v224 = vpop.f32.mrb[0].mxu0
  %v225 = vadd.f32 0.0, %v224
  %v226 = vpop.f32.mrb[0].mxu0
  %v227 = vadd.f32 0.0, %v226
  %228 = vmatprep.mubr.f32.mxu0 0.0
  %229 = vmatmul.mubr.f32.gmra.mrb[0].mxu0 %v98
  %v230 = vpop.f32.mrb[0].mxu0
  %v231 = vadd.f32 0.0, %v230
  %v232 = vpop.f32.mrb[0].mxu0
  %v233 = vadd.f32 0.0, %v232
  %234 = vmatprep.mubr.f32.mxu0 0.0
  %235 = vmatmul.mubr.f32.gmra.mrb[0].mxu0 %v101
  %v236 = vpop.f32.mrb[0].mxu0
  %v237 = vadd.f32 0.0, %v236
  %v238 = vpop.f32.mrb[0].mxu0
  %v239 = vadd.f32 0.0, %v238
  %240 = vmatprep.mubr.f32.mxu0 0.0
  %241 = vmatmul.mubr.f32.gmra.mrb[0].mxu0 %v104
  %v242 = vpop.f32.mrb[0].mxu0
  %v243 = vadd.f32 0.0, %v242
  %v244 = vpop.f32.mrb[0].mxu0
  %v245 = vadd.f32 0.0, %v244
  %246 = vmatprep.mubr.f32.mxu0 0.0
  %247 = vmatmul.mubr.f32.gmra.mrb[0].mxu0 %v107
  %v248 = vpop.f32.mrb[0].mxu0
  %v249 = vadd.f32 0.0, %v248
  %v250 = vpop.f32.mrb[0].mxu0
  %v251 = vadd.f32 0.0, %v250
  %252 = vmatprep.mubr.f32.mxu0 0.0
  %253 = vmatmul.mubr.f32.gmra.mrb[0].mxu0 %v110
  %v254 = vpop.f32.mrb[0].mxu0
  %v255 = vadd.f32 0.0, %v254
  %v256 = vpop.f32.mrb[0].mxu0
  %v257 = vadd.f32 0.0, %v256
  %258 = vmatprep.mubr.f32.mxu0 0.0
  %259 = vmatmul.mubr.f32.gmra.mrb[0].mxu0 %v113
  %v260 = vpop.f32.mrb[0].mxu0
  %v261 = vadd.f32 0.0, %v260
  %v262 = vpop.f32.mrb[0].mxu0
  %v263 = vadd.f32 0.0, %v262
  %264 = vmatprep.mubr.f32.mxu0 0.0
  %265 = vmatmul.mubr.f32.gmra.mrb[0].mxu0 %v116
  %v266 = vpop.f32.mrb[0].mxu0
  %v267 = vadd.f32 0.0, %v266
  %v268 = vpop.f32.mrb[0].mxu0
  %v269 = vadd.f32 0.0, %v268
  %270 = vmatprep.mubr.f32.mxu0 0.0
  %271 = vmatmul.mubr.f32.gmra.mrb[0].mxu0 %v119
  %v272 = vpop.f32.mrb[0].mxu0
  %v273 = vadd.f32 0.0, %v272
  %v274 = vpop.f32.mrb[0].mxu0
  %v275 = vadd.f32 0.0, %v274
  %276 = vmatprep.mubr.f32.mxu0 0.0
  %277 = vmatmul.mubr.f32.gmra.mrb[0].mxu0 %v122
  %v278 = vpop.f32.mrb[0].mxu0
  %v279 = vadd.f32 0.0, %v278
  %v280 = vpop.f32.mrb[0].mxu0
  %v281 = vadd.f32 0.0, %v280
  %282 = vmatprep.mubr.f32.mxu0 0.0
  %283 = vmatmul.mubr.f32.gmra.mrb[0].mxu0 %v125
  %v284 = vpop.f32.mrb[0].mxu0
  %v285 = vadd.f32 0.0, %v284
  %v286 = vpop.f32.mrb[0].mxu0
  %v287 = vadd.f32 0.0, %v286
  %288 = vmatprep.mubr.f32.mxu0 0.0
  %289 = vmatmul.mubr.f32.gmra.mrb[0].mxu0 %v128
  %v290 = vpop.f32.mrb[0].mxu0
  %v291 = vadd.f32 0.0, %v290
  %v292 = vpop.f32.mrb[0].mxu0
  %v293 = vadd.f32 0.0, %v292
  %294 = vmatprep.mubr.f32.mxu0 0.0
  %295 = vmatmul.mubr.f32.gmra.mrb[0].mxu0 %v131
  %v296 = vpop.f32.mrb[0].mxu0
  %v297 = vadd.f32 0.0, %v296
  %v298 = vpop.f32.mrb[0].mxu0
  %v299 = vadd.f32 0.0, %v298
  %300 = vmatprep.mubr.f32.mxu0 0.0
  %301 = vmatmul.mubr.f32.gmra.mrb[0].mxu0 %v134
  %v302 = vpop.f32.mrb[0].mxu0
  %v303 = vadd.f32 0.0, %v302
  %v304 = vpop.f32.mrb[0].mxu0
  %v305 = vadd.f32 0.0, %v304
  %306 = vmatprep.mubr.f32.mxu0 0.0
  %307 = vmatmul.mubr.f32.gmra.mrb[0].mxu0 %v137
  %v308 = vpop.f32.mrb[0].mxu0
  %v309 = vadd.f32 0.0, %v308
  %v310 = vpop.f32.mrb[0].mxu0
  %v311 = vadd.f32 0.0, %v310
  %312 = vdwg.mxu0
  %313 = vmatprep.subr.mxu0 %v73
  %314 = vmatpush1.msra.mxu0 %v72
  %315 = vmatprep.subr.mxu0 %v77
  %316 = vmatpush1.msra.mxu0 %v76
  %317 = vmatprep.subr.mxu0 %v81
  %318 = vmatpush1.msra.mxu0 %v80
  %319 = vmatprep.subr.mxu0 %v85
  %320 = vmatpush1.msra.mxu0 %v84
  %321 = vmatprep.subr.mxu0 %v150
  %322 = vmatpush1.msra.mxu0 %v147
  %323 = vmatprep.subr.mxu0 0.0
  %324 = vmatpush1.msra.mxu0 0.0
  %325 = vmatprep.subr.mxu0 0.0
  %326 = vmatpush1.msra.mxu0 0.0
  %327 = vmatprep.subr.mxu0 0.0
  %328 = vmatpush1.msra.mxu0 0.0
  %329 = vmatprep.subr.mxu0 0.0
  %330 = vmatpush1.msra.mxu0 0.0
  %331 = vmatprep.subr.mxu0 0.0
  %332 = vmatpush1.msra.mxu0 0.0
  %333 = vmatprep.subr.mxu0 0.0
  %334 = vmatpush1.msra.mxu0 0.0
  %335 = vmatprep.subr.mxu0 0.0
  %336 = vmatpush1.msra.mxu0 0.0
  %337 = vmatprep.subr.mxu0 0.0
  %338 = vmatpush1.msra.mxu0 0.0
  %339 = vmatprep.subr.mxu0 0.0
  %340 = vmatpush1.msra.mxu0 0.0
  %341 = vmatprep.subr.mxu0 0.0
  %342 = vmatpush1.msra.mxu0 0.0
  %343 = vmatprep.subr.mxu0 0.0
  %344 = vmatpush1.msra.mxu0 0.0
  %345 = vmatprep.subr.mxu0 0.0
  %346 = vmatpush1.msra.mxu0 0.0
  %347 = vmatprep.subr.mxu0 0.0
  %348 = vmatpush1.msra.mxu0 0.0
  %349 = vmatprep.subr.mxu0 0.0
  %350 = vmatpush1.msra.mxu0 0.0
  %351 = vmatprep.subr.mxu0 0.0
  %352 = vmatpush1.msra.mxu0 0.0
  %353 = vmatprep.subr.mxu0 0.0
  %354 = vmatpush1.msra.mxu0 0.0
  %355 = vmatprep.subr.mxu0 0.0
  %356 = vmatpush1.msra.mxu0 0.0
  %357 = vmatprep.subr.mxu0 0.0
  %358 = vmatpush1.msra.mxu0 0.0
  %359 = vmatprep.subr.mxu0 0.0
  %360 = vmatpush1.msra.mxu0 0.0
  %361 = vmatprep.subr.mxu0 0.0
  %362 = vmatpush1.msra.mxu0 0.0
  %363 = vmatprep.subr.mxu0 0.0
  %364 = vmatpush1.msra.mxu0 0.0
  %365 = vmatprep.subr.mxu0 0.0
  %366 = vmatpush1.msra.mxu0 0.0
  %367 = vmatprep.subr.mxu0 0.0
  %368 = vmatpush1.msra.mxu0 0.0
  %369 = vmatprep.subr.mxu0 0.0
  %370 = vmatpush1.msra.mxu0 0.0
  %371 = vmatprep.subr.mxu0 0.0
  %372 = vmatpush1.msra.mxu0 0.0
  %373 = vmatprep.subr.mxu0 0.0
  %374 = vmatpush1.msra.mxu0 0.0
  %375 = vmatprep.subr.mxu0 0.0
  %376 = vmatpush1.msra.mxu0 0.0
  %377 = vmatprep.mubr.f32.mxu0 0.0
  %378 = vmatmul.mubr.f32.gmra.mrb[0].mxu0 %v92
  %v379 = vpop.f32.mrb[0].mxu0
  %v380 = vadd.f32 0.0, %v379
  %v381 = vpop.f32.mrb[0].mxu0
  %v382 = vadd.f32 0.0, %v381
  %383 = vmatprep.mubr.f32.mxu0 0.0
  %384 = vmatmul.mubr.f32.gmra.mrb[0].mxu0 %v95
  %v385 = vpop.f32.mrb[0].mxu0
  %v386 = vadd.f32 0.0, %v385
  %v387 = vpop.f32.mrb[0].mxu0
  %v388 = vadd.f32 0.0, %v387
  %389 = vmatprep.mubr.f32.mxu0 0.0
  %390 = vmatmul.mubr.f32.gmra.mrb[0].mxu0 %v98
  %v391 = vpop.f32.mrb[0].mxu0
  %v392 = vadd.f32 0.0, %v391
  %v393 = vpop.f32.mrb[0].mxu0
  %v394 = vadd.f32 0.0, %v393
  %395 = vmatprep.mubr.f32.mxu0 0.0
  %396 = vmatmul.mubr.f32.gmra.mrb[0].mxu0 %v101
  %v397 = vpop.f32.mrb[0].mxu0
  %v398 = vadd.f32 0.0, %v397
  %v399 = vpop.f32.mrb[0].mxu0
  %v400 = vadd.f32 0.0, %v399
  %401 = vmatprep.mubr.f32.mxu0 0.0
  %402 = vmatmul.mubr.f32.gmra.mrb[0].mxu0 %v104
  %v403 = vpop.f32.mrb[0].mxu0
  %v404 = vadd.f32 0.0, %v403
  %v405 = vpop.f32.mrb[0].mxu0
  %v406 = vadd.f32 0.0, %v405
  %407 = vmatprep.mubr.f32.mxu0 0.0
  %408 = vmatmul.mubr.f32.gmra.mrb[0].mxu0 %v107
  %v409 = vpop.f32.mrb[0].mxu0
  %v410 = vadd.f32 0.0, %v409
  %v411 = vpop.f32.mrb[0].mxu0
  %v412 = vadd.f32 0.0, %v411
  %413 = vmatprep.mubr.f32.mxu0 0.0
  %414 = vmatmul.mubr.f32.gmra.mrb[0].mxu0 %v110
  %v415 = vpop.f32.mrb[0].mxu0
  %v416 = vadd.f32 0.0, %v415
  %v417 = vpop.f32.mrb[0].mxu0
  %v418 = vadd.f32 0.0, %v417
  %419 = vmatprep.mubr.f32.mxu0 0.0
  %420 = vmatmul.mubr.f32.gmra.mrb[0].mxu0 %v113
  %v421 = vpop.f32.mrb[0].mxu0
  %v422 = vadd.f32 0.0, %v421
  %v423 = vpop.f32.mrb[0].mxu0
  %v424 = vadd.f32 0.0, %v423
  %425 = vmatprep.mubr.f32.mxu0 0.0
  %426 = vmatmul.mubr.f32.gmra.mrb[0].mxu0 %v116
  %v427 = vpop.f32.mrb[0].mxu0
  %v428 = vadd.f32 0.0, %v427
  %v429 = vpop.f32.mrb[0].mxu0
  %v430 = vadd.f32 0.0, %v429
  %431 = vmatprep.mubr.f32.mxu0 0.0
  %432 = vmatmul.mubr.f32.gmra.mrb[0].mxu0 %v119
  %v433 = vpop.f32.mrb[0].mxu0
  %v434 = vadd.f32 0.0, %v433
  %v435 = vpop.f32.mrb[0].mxu0
  %v436 = vadd.f32 0.0, %v435
  %437 = vmatprep.mubr.f32.mxu0 0.0
  %438 = vmatmul.mubr.f32.gmra.mrb[0].mxu0 %v122
  %v439 = vpop.f32.mrb[0].mxu0
  %v440 = vadd.f32 0.0, %v439
  %v441 = vpop.f32.mrb[0].mxu0
  %v442 = vadd.f32 0.0, %v441
  %443 = vmatprep.mubr.f32.mxu0 0.0
  %444 = vmatmul.mubr.f32.gmra.mrb[0].mxu0 %v125
  %v445 = vpop.f32.mrb[0].mxu0
  %v446 = vadd.f32 0.0, %v445
  %v447 = vpop.f32.mrb[0].mxu0
  %v448 = vadd.f32 0.0, %v447
  %449 = vmatprep.mubr.f32.mxu0 0.0
  %450 = vmatmul.mubr.f32.gmra.mrb[0].mxu0 %v128
  %v451 = vpop.f32.mrb[0].mxu0
  %v452 = vadd.f32 0.0, %v451
  %v453 = vpop.f32.mrb[0].mxu0
  %v454 = vadd.f32 0.0, %v453
  %455 = vmatprep.mubr.f32.mxu0 0.0
  %456 = vmatmul.mubr.f32.gmra.mrb[0].mxu0 %v131
  %v457 = vpop.f32.mrb[0].mxu0
  %v458 = vadd.f32 0.0, %v457
  %v459 = vpop.f32.mrb[0].mxu0
  %v460 = vadd.f32 0.0, %v459
  %461 = vmatprep.mubr.f32.mxu0 0.0
  %462 = vmatmul.mubr.f32.gmra.mrb[0].mxu0 %v134
  %v463 = vpop.f32.mrb[0].mxu0
  %v464 = vadd.f32 0.0, %v463
  %v465 = vpop.f32.mrb[0].mxu0
  %v466 = vadd.f32 0.0, %v465
  %467 = vmatprep.mubr.f32.mxu0 0.0
  %468 = vmatmul.mubr.f32.gmra.mrb[0].mxu0 %v137
  %v469 = vpop.f32.mrb[0].mxu0
  %v470 = vadd.f32 0.0, %v469
  %v471 = vpop.f32.mrb[0].mxu0
  %v472 = vadd.f32 0.0, %v471
  %473 = vdwg.mxu0
  %v474 = vld [vmem:[%s2] sm:$0xff]
  %v475 = vld [vmem:[%s2 + $0x8] sm:$0xff]
  %v476 = vld [vmem:[%s2 + $0x10] sm:$0xff]
  %v477 = vld [vmem:[%s2 + $0x18] sm:$0xff]
  %v478 = vld [vmem:[%s2 + $0x20] sm:$0xff]
  %v479 = vld [vmem:[%s2 + $0x28] sm:$0xff]
  %v480 = vld [vmem:[%s2 + $0x30] sm:$0xff]
  %v481 = vld [vmem:[%s2 + $0x38] sm:$0xff]
  %v482 = vld [vmem:[%s2 + $0x40] sm:$0xff]
  %v483 = vld [vmem:[%s2 + $0x48] sm:$0xff]
  %v484 = vld [vmem:[%s2 + $0x50] sm:$0xff]
  %v485 = vld [vmem:[%s2 + $0x58] sm:$0xff]
  %v486 = vld [vmem:[%s2 + $0x60] sm:$0xff]
  %v487 = vld [vmem:[%s2 + $0x68] sm:$0xff]
  %v488 = vld [vmem:[%s2 + $0x70] sm:$0xff]
  %v489 = vld [vmem:[%s2 + $0x78] sm:$0xff]
  %v490 = vadd.f32 %v219, %v221
  %v491 = vadd.f32 %v490, %v380
  %v492 = vadd.f32 %v491, %v382
  %493 = vadd.xlane.f32.xlu0 %v492
  %v494 = vpop.xlane.xlu0 %493
  %v495 = vadd.f32 %v225, %v227
  %v496 = vadd.f32 %v495, %v386
  %v497 = vadd.f32 %v496, %v388
  %498 = vadd.xlane.f32.xlu0 %v497
  %v499 = vpop.xlane.xlu0 %498
  %v500 = vadd.f32 %v231, %v233
  %v501 = vadd.f32 %v500, %v392
  %v502 = vadd.f32 %v501, %v394
  %503 = vadd.xlane.f32.xlu0 %v502
  %v504 = vpop.xlane.xlu0 %503
  %v505 = vadd.f32 %v237, %v239
  %v506 = vadd.f32 %v505, %v398
  %v507 = vadd.f32 %v506, %v400
  %508 = vadd.xlane.f32.xlu0 %v507
  %v509 = vpop.xlane.xlu0 %508
  %v510 = vadd.f32 %v243, %v245
  %v511 = vadd.f32 %v510, %v404
  %v512 = vadd.f32 %v511, %v406
  %513 = vadd.xlane.f32.xlu0 %v512
  %v514 = vpop.xlane.xlu0 %513
  %v515 = vadd.f32 %v249, %v251
  %v516 = vadd.f32 %v515, %v410
  %v517 = vadd.f32 %v516, %v412
  %518 = vadd.xlane.f32.xlu0 %v517
  %v519 = vpop.xlane.xlu0 %518
  %v520 = vadd.f32 %v255, %v257
  %v521 = vadd.f32 %v520, %v416
  %v522 = vadd.f32 %v521, %v418
  %523 = vadd.xlane.f32.xlu0 %v522
  %v524 = vpop.xlane.xlu0 %523
  %v525 = vadd.f32 %v261, %v263
  %v526 = vadd.f32 %v525, %v422
  %v527 = vadd.f32 %v526, %v424
  %528 = vadd.xlane.f32.xlu0 %v527
  %v529 = vpop.xlane.xlu0 %528
  %v530 = vadd.f32 %v267, %v269
  %v531 = vadd.f32 %v530, %v428
  %v532 = vadd.f32 %v531, %v430
  %533 = vadd.xlane.f32.xlu0 %v532
  %v534 = vpop.xlane.xlu0 %533
  %v535 = vadd.f32 %v273, %v275
  %v536 = vadd.f32 %v535, %v434
  %v537 = vadd.f32 %v536, %v436
  %538 = vadd.xlane.f32.xlu0 %v537
  %v539 = vpop.xlane.xlu0 %538
  %v540 = vadd.f32 %v279, %v281
  %v541 = vadd.f32 %v540, %v440
  %v542 = vadd.f32 %v541, %v442
  %543 = vadd.xlane.f32.xlu0 %v542
  %v544 = vpop.xlane.xlu0 %543
  %v545 = vadd.f32 %v285, %v287
  %v546 = vadd.f32 %v545, %v446
  %v547 = vadd.f32 %v546, %v448
  %548 = vadd.xlane.f32.xlu0 %v547
  %v549 = vpop.xlane.xlu0 %548
  %v550 = vadd.f32 %v291, %v293
  %v551 = vadd.f32 %v550, %v452
  %v552 = vadd.f32 %v551, %v454
  %553 = vadd.xlane.f32.xlu0 %v552
  %v554 = vpop.xlane.xlu0 %553
  %v555 = vadd.f32 %v297, %v299
  %v556 = vadd.f32 %v555, %v458
  %v557 = vadd.f32 %v556, %v460
  %558 = vadd.xlane.f32.xlu0 %v557
  %v559 = vpop.xlane.xlu0 %558
  %v560 = vadd.f32 %v303, %v305
  %v561 = vadd.f32 %v560, %v464
  %v562 = vadd.f32 %v561, %v466
  %563 = vadd.xlane.f32.xlu0 %v562
  %v564 = vpop.xlane.xlu0 %563
  %v565 = vadd.f32 %v309, %v311
  %v566 = vadd.f32 %v565, %v470
  %v567 = vadd.f32 %v566, %v472
  %568 = vadd.xlane.f32.xlu0 %v567
  %v569 = vpop.xlane.xlu0 %568
  %v570 = vadd.f32 %v474, %v494
  %v571 = vadd.f32 %v475, %v499
  %v572 = vadd.f32 %v476, %v504
  %v573 = vadd.f32 %v477, %v509
  %v574 = vadd.f32 %v478, %v514
  %v575 = vadd.f32 %v479, %v519
  %v576 = vadd.f32 %v480, %v524
  %v577 = vadd.f32 %v481, %v529
  %v578 = vadd.f32 %v482, %v534
  %v579 = vadd.f32 %v483, %v539
  %v580 = vadd.f32 %v484, %v544
  %v581 = vadd.f32 %v485, %v549
  %v582 = vadd.f32 %v486, %v554
  %v583 = vadd.f32 %v487, %v559
  %v584 = vadd.f32 %v488, %v564
  %v585 = vadd.f32 %v489, %v569
  %vm586 = vcmask 7168
  %587 = vst.msk [vmem:[%s2] sm:$0xff] %vm586, %v570
  %588 = vst.msk [vmem:[%s2 + $0x8] sm:$0xff] %vm586, %v571
  %589 = vst.msk [vmem:[%s2 + $0x10] sm:$0xff] %vm586, %v572
  %590 = vst.msk [vmem:[%s2 + $0x18] sm:$0xff] %vm586, %v573
  %591 = vst.msk [vmem:[%s2 + $0x20] sm:$0xff] %vm586, %v574
  %592 = vst.msk [vmem:[%s2 + $0x28] sm:$0xff] %vm586, %v575
  %593 = vst.msk [vmem:[%s2 + $0x30] sm:$0xff] %vm586, %v576
  %594 = vst.msk [vmem:[%s2 + $0x38] sm:$0xff] %vm586, %v577
  %595 = vst.msk [vmem:[%s2 + $0x40] sm:$0xff] %vm586, %v578
  %596 = vst.msk [vmem:[%s2 + $0x48] sm:$0xff] %vm586, %v579
  %597 = vst.msk [vmem:[%s2 + $0x50] sm:$0xff] %vm586, %v580
  %598 = vst.msk [vmem:[%s2 + $0x58] sm:$0xff] %vm586, %v581
  %599 = vst.msk [vmem:[%s2 + $0x60] sm:$0xff] %vm586, %v582
  %600 = vst.msk [vmem:[%s2 + $0x68] sm:$0xff] %vm586, %v583
  %601 = vst.msk [vmem:[%s2 + $0x70] sm:$0xff] %vm586, %v584
  %602 = vst.msk [vmem:[%s2 + $0x78] sm:$0xff] %vm586, %v585
  %v603 = vld [vmem:[%s2] sm:$0xff]
  %v604 = vld [vmem:[%s2 + $0x8] sm:$0xff]
  %v605 = vld [vmem:[%s2 + $0x10] sm:$0xff]
  %v606 = vld [vmem:[%s2 + $0x18] sm:$0xff]
  %v607 = vld [vmem:[%s2 + $0x20] sm:$0xff]
  %v608 = vld [vmem:[%s2 + $0x28] sm:$0xff]
  %v609 = vld [vmem:[%s2 + $0x30] sm:$0xff]
  %v610 = vld [vmem:[%s2 + $0x38] sm:$0xff]
  %v611 = vld [vmem:[%s2 + $0x40] sm:$0xff]
  %v612 = vld [vmem:[%s2 + $0x48] sm:$0xff]
  %v613 = vld [vmem:[%s2 + $0x50] sm:$0xff]
  %v614 = vld [vmem:[%s2 + $0x58] sm:$0xff]
  %v615 = vld [vmem:[%s2 + $0x60] sm:$0xff]
  %v616 = vld [vmem:[%s2 + $0x68] sm:$0xff]
  %v617 = vld [vmem:[%s2 + $0x70] sm:$0xff]
  %v618 = vld [vmem:[%s2 + $0x78] sm:$0xff]
  %v619 = vmul.f32 %v219, %v219
  %v620 = vmul.f32 %v221, %v221
  %v621 = vmul.f32 %v380, %v380
  %v622 = vmul.f32 %v382, %v382
  %v623 = vmul.f32 %v225, %v225
  %v624 = vmul.f32 %v227, %v227
  %v625 = vmul.f32 %v386, %v386
  %v626 = vmul.f32 %v388, %v388
  %v627 = vmul.f32 %v231, %v231
  %v628 = vmul.f32 %v233, %v233
  %v629 = vmul.f32 %v392, %v392
  %v630 = vmul.f32 %v394, %v394
  %v631 = vmul.f32 %v237, %v237
  %v632 = vmul.f32 %v239, %v239
  %v633 = vmul.f32 %v398, %v398
  %v634 = vmul.f32 %v400, %v400
  %v635 = vmul.f32 %v243, %v243
  %v636 = vmul.f32 %v245, %v245
  %v637 = vmul.f32 %v404, %v404
  %v638 = vmul.f32 %v406, %v406
  %v639 = vmul.f32 %v249, %v249
  %v640 = vmul.f32 %v251, %v251
  %v641 = vmul.f32 %v410, %v410
  %v642 = vmul.f32 %v412, %v412
  %v643 = vmul.f32 %v255, %v255
  %v644 = vmul.f32 %v257, %v257
  %v645 = vmul.f32 %v416, %v416
  %v646 = vmul.f32 %v418, %v418
  %v647 = vmul.f32 %v261, %v261
  %v648 = vmul.f32 %v263, %v263
  %v649 = vmul.f32 %v422, %v422
  %v650 = vmul.f32 %v424, %v424
  %v651 = vmul.f32 %v267, %v267
  %v652 = vmul.f32 %v269, %v269
  %v653 = vmul.f32 %v428, %v428
  %v654 = vmul.f32 %v430, %v430
  %v655 = vmul.f32 %v273, %v273
  %v656 = vmul.f32 %v275, %v275
  %v657 = vmul.f32 %v434, %v434
  %v658 = vmul.f32 %v436, %v436
  %v659 = vmul.f32 %v279, %v279
  %v660 = vmul.f32 %v281, %v281
  %v661 = vmul.f32 %v440, %v440
  %v662 = vmul.f32 %v442, %v442
  %v663 = vmul.f32 %v285, %v285
  %v664 = vmul.f32 %v287, %v287
  %v665 = vmul.f32 %v446, %v446
  %v666 = vmul.f32 %v448, %v448
  %v667 = vmul.f32 %v291, %v291
  %v668 = vmul.f32 %v293, %v293
  %v669 = vmul.f32 %v452, %v452
  %v670 = vmul.f32 %v454, %v454
  %v671 = vmul.f32 %v297, %v297
  %v672 = vmul.f32 %v299, %v299
  %v673 = vmul.f32 %v458, %v458
  %v674 = vmul.f32 %v460, %v460
  %v675 = vmul.f32 %v303, %v303
  %v676 = vmul.f32 %v305, %v305
  %v677 = vmul.f32 %v464, %v464
  %v678 = vmul.f32 %v466, %v466
  %v679 = vmul.f32 %v309, %v309
  %v680 = vmul.f32 %v311, %v311
  %v681 = vmul.f32 %v470, %v470
  %v682 = vmul.f32 %v472, %v472
  %v683 = vadd.f32 %v619, %v620
  %v684 = vadd.f32 %v683, %v621
  %v685 = vadd.f32 %v684, %v622
  %686 = vadd.xlane.f32.xlu0 %v685
  %v687 = vpop.xlane.xlu0 %686
  %v688 = vadd.f32 %v623, %v624
  %v689 = vadd.f32 %v688, %v625
  %v690 = vadd.f32 %v689, %v626
  %691 = vadd.xlane.f32.xlu0 %v690
  %v692 = vpop.xlane.xlu0 %691
  %v693 = vadd.f32 %v627, %v628
  %v694 = vadd.f32 %v693, %v629
  %v695 = vadd.f32 %v694, %v630
  %696 = vadd.xlane.f32.xlu0 %v695
  %v697 = vpop.xlane.xlu0 %696
  %v698 = vadd.f32 %v631, %v632
  %v699 = vadd.f32 %v698, %v633
  %v700 = vadd.f32 %v699, %v634
  %701 = vadd.xlane.f32.xlu0 %v700
  %v702 = vpop.xlane.xlu0 %701
  %v703 = vadd.f32 %v635, %v636
  %v704 = vadd.f32 %v703, %v637
  %v705 = vadd.f32 %v704, %v638
  %706 = vadd.xlane.f32.xlu0 %v705
  %v707 = vpop.xlane.xlu0 %706
  %v708 = vadd.f32 %v639, %v640
  %v709 = vadd.f32 %v708, %v641
  %v710 = vadd.f32 %v709, %v642
  %711 = vadd.xlane.f32.xlu0 %v710
  %v712 = vpop.xlane.xlu0 %711
  %v713 = vadd.f32 %v643, %v644
  %v714 = vadd.f32 %v713, %v645
  %v715 = vadd.f32 %v714, %v646
  %716 = vadd.xlane.f32.xlu0 %v715
  %v717 = vpop.xlane.xlu0 %716
  %v718 = vadd.f32 %v647, %v648
  %v719 = vadd.f32 %v718, %v649
  %v720 = vadd.f32 %v719, %v650
  %721 = vadd.xlane.f32.xlu0 %v720
  %v722 = vpop.xlane.xlu0 %721
  %v723 = vadd.f32 %v651, %v652
  %v724 = vadd.f32 %v723, %v653
  %v725 = vadd.f32 %v724, %v654
  %726 = vadd.xlane.f32.xlu0 %v725
  %v727 = vpop.xlane.xlu0 %726
  %v728 = vadd.f32 %v655, %v656
  %v729 = vadd.f32 %v728, %v657
  %v730 = vadd.f32 %v729, %v658
  %731 = vadd.xlane.f32.xlu0 %v730
  %v732 = vpop.xlane.xlu0 %731
  %v733 = vadd.f32 %v659, %v660
  %v734 = vadd.f32 %v733, %v661
  %v735 = vadd.f32 %v734, %v662
  %736 = vadd.xlane.f32.xlu0 %v735
  %v737 = vpop.xlane.xlu0 %736
  %v738 = vadd.f32 %v663, %v664
  %v739 = vadd.f32 %v738, %v665
  %v740 = vadd.f32 %v739, %v666
  %741 = vadd.xlane.f32.xlu0 %v740
  %v742 = vpop.xlane.xlu0 %741
  %v743 = vadd.f32 %v667, %v668
  %v744 = vadd.f32 %v743, %v669
  %v745 = vadd.f32 %v744, %v670
  %746 = vadd.xlane.f32.xlu0 %v745
  %v747 = vpop.xlane.xlu0 %746
  %v748 = vadd.f32 %v671, %v672
  %v749 = vadd.f32 %v748, %v673
  %v750 = vadd.f32 %v749, %v674
  %751 = vadd.xlane.f32.xlu0 %v750
  %v752 = vpop.xlane.xlu0 %751
  %v753 = vadd.f32 %v675, %v676
  %v754 = vadd.f32 %v753, %v677
  %v755 = vadd.f32 %v754, %v678
  %756 = vadd.xlane.f32.xlu0 %v755
  %v757 = vpop.xlane.xlu0 %756
  %v758 = vadd.f32 %v679, %v680
  %v759 = vadd.f32 %v758, %v681
  %v760 = vadd.f32 %v759, %v682
  %761 = vadd.xlane.f32.xlu0 %v760
  %v762 = vpop.xlane.xlu0 %761
  %v763 = vadd.f32 %v603, %v687
  %v764 = vadd.f32 %v604, %v692
  %v765 = vadd.f32 %v605, %v697
  %v766 = vadd.f32 %v606, %v702
  %v767 = vadd.f32 %v607, %v707
  %v768 = vadd.f32 %v608, %v712
  %v769 = vadd.f32 %v609, %v717
  %v770 = vadd.f32 %v610, %v722
  %v771 = vadd.f32 %v611, %v727
  %v772 = vadd.f32 %v612, %v732
  %v773 = vadd.f32 %v613, %v737
  %v774 = vadd.f32 %v614, %v742
  %v775 = vadd.f32 %v615, %v747
  %v776 = vadd.f32 %v616, %v752
  %v777 = vadd.f32 %v617, %v757
  %v778 = vadd.f32 %v618, %v762
  %vm779 = vcmask 15368
  %780 = vst.msk [vmem:[%s2] sm:$0xff] %vm779, %v763
  %781 = vst.msk [vmem:[%s2 + $0x8] sm:$0xff] %vm779, %v764
  %782 = vst.msk [vmem:[%s2 + $0x10] sm:$0xff] %vm779, %v765
  %783 = vst.msk [vmem:[%s2 + $0x18] sm:$0xff] %vm779, %v766
  %784 = vst.msk [vmem:[%s2 + $0x20] sm:$0xff] %vm779, %v767
  %785 = vst.msk [vmem:[%s2 + $0x28] sm:$0xff] %vm779, %v768
  %786 = vst.msk [vmem:[%s2 + $0x30] sm:$0xff] %vm779, %v769
  %787 = vst.msk [vmem:[%s2 + $0x38] sm:$0xff] %vm779, %v770
  %788 = vst.msk [vmem:[%s2 + $0x40] sm:$0xff] %vm779, %v771
  %789 = vst.msk [vmem:[%s2 + $0x48] sm:$0xff] %vm779, %v772
  %790 = vst.msk [vmem:[%s2 + $0x50] sm:$0xff] %vm779, %v773
  %791 = vst.msk [vmem:[%s2 + $0x58] sm:$0xff] %vm779, %v774
  %792 = vst.msk [vmem:[%s2 + $0x60] sm:$0xff] %vm779, %v775
  %793 = vst.msk [vmem:[%s2 + $0x68] sm:$0xff] %vm779, %v776
  %794 = vst.msk [vmem:[%s2 + $0x70] sm:$0xff] %vm779, %v777
  %795 = vst.msk [vmem:[%s2 + $0x78] sm:$0xff] %vm779, %v778
  // Predicated region
  $region14: #{convolutional_block.2} parent=0 // pred_check
    _
  $region15: #{convolutional_block.2} parent=0 // pred_check_branch
    %797 = sbr.rel (0) target = $region17
  $region16: #{convolutional_block.2} parent=0 // pred_region
    _
  $region17: #{convolutional_block.2} parent=0 // pred_fallthru
    _
  // Predicated region
  $region18: #{convolutional_block.2} parent=0 // pred_check
    _
  $region19: #{convolutional_block.2} parent=0 // pred_check_branch
    %799 = sbr.rel (0) target = $region21
  $region20: #{convolutional_block.2} parent=0 // pred_region
    _
  $region21: #{convolutional_block.2} parent=0 // pred_fallthru
    _

</llo_original>
